<compile_context>
chip_gen: v6e
topology: v6e:2x2x1
jax: 0.10.0
libtpu: 0.0.40
codegen_flags: <defaults>
</compile_context>

<pallas_src>
import functools

import jax
import jax.numpy as jnp
from jax.experimental import pallas as pl
from jax.experimental.pallas import tpu as pltpu

_LANE = 128


def _vmem_capacity_bytes():
    """Physical VMEM per TensorCore; conservative fallback = v7x (64 MiB)."""
    try:
        info = pltpu.get_tpu_info()
        cap = getattr(info, "vmem_capacity_bytes", None)
        if cap:
            return int(cap)
    except Exception:
        pass
    return 64 * 1024 * 1024


def _bn1d_kernel(x_ref, gamma_ref, beta_ref, rm_ref, rv_ref,
                 y_ref, new_rm_ref, new_rv_ref, *, eps, momentum, inv_b):
    # One (B, TILE_F) feature-column tile per grid step; columns are
    # independent, so the (possibly garbage) out-of-range lanes of the last
    # partial tile never contaminate valid columns, and Pallas drops their
    # stores.
    x = x_ref[...]                                        # (B, TILE_F), native dtype
    x32 = x.astype(jnp.float32)

    # Single pass over the tile for both moments (f32 accumulation).
    s1 = jnp.sum(x32, axis=0, keepdims=True)              # (1, TILE_F)
    s2 = jnp.sum(x32 * x32, axis=0, keepdims=True)        # (1, TILE_F)
    mean = s1 * inv_b
    var = jnp.maximum(s2 * inv_b - mean * mean, 0.0)       # biased variance

    gamma = gamma_ref[...].astype(jnp.float32)             # (1, TILE_F)
    beta = beta_ref[...].astype(jnp.float32)

    # Fused affine: y = x * scale + shift (rsqrt goes to the EUP slot).
    scale = gamma * jax.lax.rsqrt(var + eps)
    shift = beta - mean * scale
    y_ref[...] = (x * scale.astype(x.dtype) + shift.astype(x.dtype)).astype(y_ref.dtype)

    # Running-stat updates (same rule as the module: biased var here too).
    rm = rm_ref[...].astype(jnp.float32)
    rv = rv_ref[...].astype(jnp.float32)
    new_rm_ref[...] = ((1.0 - momentum) * rm + momentum * mean).astype(new_rm_ref.dtype)
    new_rv_ref[...] = ((1.0 - momentum) * rv + momentum * var).astype(new_rv_ref.dtype)


def batchnorm1d(x, gamma, beta, running_mean, running_var,
                *, eps=1e-5, momentum=0.1, tile_f=None):
    """Forward pass of BatchNorm1d (training mode).

    x: (B, F); gamma/beta/running_mean/running_var: (F,)
    Returns (output (B, F), new_running_mean (F,), new_running_var (F,)).
    """
    B, F = x.shape
    capacity = _vmem_capacity_bytes()

    if tile_f is None:
        # Budget ~40% of physical VMEM for: double-buffered x-in + y-out
        # (native dtype) plus the f32 statistics temporaries.
        budget = max(8 << 20, int(capacity * 0.4))
        per_col = B * (4 * x.dtype.itemsize + 12)
        tile_f = (budget // max(per_col, 1)) // _LANE * _LANE
        tile_f = int(max(_LANE, min(8192, tile_f)))

        # Keep a handful of grid steps when F allows it, so v7x's two
        # TensorCores both get work on the "parallel" axis and the BlockSpec
        # pipeline can double-buffer.
        n_lane_blocks = pl.cdiv(F, _LANE)
        target_tiles = min(8, n_lane_blocks)
        tile_f = min(tile_f, max(_LANE, (n_lane_blocks // target_tiles) * _LANE))

    tile_f = max(_LANE, (int(tile_f) // _LANE) * _LANE)
    grid_f = pl.cdiv(F, tile_f)
    Fp = grid_f * tile_f  # only the tiny (F,) vectors get padded to this

    # TODO(synk): add a batch-tiled two-pass (s1/s2 accumulation) path for very
    # large B, where a full (B, 128) column no longer fits in VMEM.

    def _vec(v):
        v = v.reshape(1, F)
        if Fp != F:
            v = jnp.pad(v, ((0, 0), (0, Fp - F)))
        return v

    gp, bp, rmp, rvp = _vec(gamma), _vec(beta), _vec(running_mean), _vec(running_var)

    kernel = functools.partial(_bn1d_kernel, eps=float(eps),
                               momentum=float(momentum), inv_b=1.0 / B)

    x_spec = pl.BlockSpec((B, tile_f), lambda j: (0, j))
    vec_spec = pl.BlockSpec((1, tile_f), lambda j: (0, j))

    # Scoped VMEM: enough for the double-buffered tiles + f32 temporaries, but
    # always leave >=16 MiB of physical headroom (v7x only has 64 MiB total).
    per_step = B * tile_f * (4 * x.dtype.itemsize + 12)
    vmem_limit = int(min(capacity - (16 << 20),
                         max(32 << 20, per_step + (4 << 20))))

    y, new_rm, new_rv = pl.pallas_call(
        kernel,
        out_shape=(
            jax.ShapeDtypeStruct((B, F), x.dtype),
            jax.ShapeDtypeStruct((1, Fp), running_mean.dtype),
            jax.ShapeDtypeStruct((1, Fp), running_var.dtype),
        ),
        grid_spec=pltpu.PrefetchScalarGridSpec(
            num_scalar_prefetch=0,
            grid=(grid_f,),
            in_specs=[x_spec, vec_spec, vec_spec, vec_spec, vec_spec],
            out_specs=(x_spec, vec_spec, vec_spec),
        ),
        compiler_params=pltpu.CompilerParams(
            dimension_semantics=("parallel",),
            vmem_limit_bytes=vmem_limit,
        ),
    )(x, gp, bp, rmp, rvp)

    return y, new_rm[0, :F], new_rv[0, :F]


def _reference(x, gamma, beta, rm, rv, eps, momentum):
    mean = jnp.mean(x, axis=0)
    var = jnp.mean((x - mean) ** 2, axis=0)          # unbiased=False
    y = (x - mean) / jnp.sqrt(var + eps)
    y = gamma * y + beta
    new_rm = (1.0 - momentum) * rm + momentum * mean
    new_rv = (1.0 - momentum) * rv + momentum * var  # module uses biased var here too
    return y, new_rm, new_rv


if __name__ == "__main__":
    eps, momentum = 1e-5, 0.1

    # Case 1: small shapes implied by the module; F < 128 exercises the
    # single partial-block (masked store) path with no host-side padding of x.
    B, F = 8, 32
    key = jax.random.PRNGKey(0)
    x = jax.random.normal(key, (B, F), dtype=jnp.float32) * 2.0 + 0.5
    gamma = jnp.ones((F,), dtype=jnp.float32)
    beta = jnp.zeros((F,), dtype=jnp.float32)
    running_mean = jnp.zeros((F,), dtype=jnp.float32)
    running_var = jnp.ones((F,), dtype=jnp.float32)

    y, new_rm, new_rv = batchnorm1d(x, gamma, beta, running_mean, running_var,
                                    eps=eps, momentum=momentum)
    jax.block_until_ready((y, new_rm, new_rv))

    y_ref, rm_ref, rv_ref = _reference(x, gamma, beta, running_mean, running_var,
                                       eps, momentum)
    assert jnp.allclose(y, y_ref, atol=1e-5), "output mismatch"
    assert jnp.allclose(new_rm, rm_ref, atol=1e-6), "running_mean mismatch"
    assert jnp.allclose(new_rv, rv_ref, atol=1e-5), "running_var mismatch"

    # Case 2: multi-tile grid with a ragged last feature tile (F=300, tile=128).
    B2, F2 = 16, 300
    k2 = jax.random.PRNGKey(1)
    x2 = jax.random.normal(k2, (B2, F2), dtype=jnp.float32) - 1.0
    g2 = jnp.linspace(0.5, 1.5, F2, dtype=jnp.float32)
    b2 = jnp.linspace(-0.2, 0.2, F2, dtype=jnp.float32)
    rm2 = jnp.zeros((F2,), dtype=jnp.float32)
    rv2 = jnp.ones((F2,), dtype=jnp.float32)

    y2, nrm2, nrv2 = batchnorm1d(x2, g2, b2, rm2, rv2,
                                 eps=eps, momentum=momentum, tile_f=128)
    jax.block_until_ready((y2, nrm2, nrv2))

    y2_ref, rm2_ref, rv2_ref = _reference(x2, g2, b2, rm2, rv2, eps, momentum)
    assert jnp.allclose(y2, y2_ref, atol=1e-5), "output mismatch (tiled)"
    assert jnp.allclose(nrm2, rm2_ref, atol=1e-6), "running_mean mismatch (tiled)"
    assert jnp.allclose(nrv2, rv2_ref, atol=1e-5), "running_var mismatch (tiled)"

    print("KERNEL_OK")
</pallas_src>

<mosaic_0001>
module attributes {stable_mosaic.version = 11 : i64} {
  func.func @_bn1d_kernel(%arg0: i32, %arg1: memref<8x128xf32, #tpu.memory_space<vmem>>, %arg2: memref<1x128xf32, #tpu.memory_space<vmem>>, %arg3: memref<1x128xf32, #tpu.memory_space<vmem>>, %arg4: memref<1x128xf32, #tpu.memory_space<vmem>>, %arg5: memref<1x128xf32, #tpu.memory_space<vmem>>, %arg6: memref<8x128xf32, #tpu.memory_space<vmem>>, %arg7: memref<1x128xf32, #tpu.memory_space<vmem>>, %arg8: memref<1x128xf32, #tpu.memory_space<vmem>>) attributes {dimension_semantics = [#tpu.dimension_semantics<parallel>], iteration_bounds = array<i64: 1>, scalar_prefetch = 0 : i64, scratch_operands = 0 : i64, tpu.core_type = #tpu.core_type<tc>, window_params = [{transform_indices = @transform_0, window_bounds = array<i64: 8, 128>}, {transform_indices = @transform_1, window_bounds = array<i64: 1, 128>}, {transform_indices = @transform_2, window_bounds = array<i64: 1, 128>}, {transform_indices = @transform_3, window_bounds = array<i64: 1, 128>}, {transform_indices = @transform_4, window_bounds = array<i64: 1, 128>}, {transform_indices = @transform_5, window_bounds = array<i64: 8, 128>}, {transform_indices = @transform_6, window_bounds = array<i64: 1, 128>}, {transform_indices = @transform_7, window_bounds = array<i64: 1, 128>}]} {
    %c0 = arith.constant 0 : index
    %c0_0 = arith.constant 0 : index
    %0 = vector.load %arg1[%c0, %c0_0] : memref<8x128xf32, #tpu.memory_space<vmem>>, vector<8x128xf32>
    %cst = arith.constant dense<0.000000e+00> : vector<128xf32>
    %1 = vector.multi_reduction <add>, %0, %cst [0] : vector<8x128xf32> to vector<128xf32>
    %2 = vector.shape_cast %1 : vector<128xf32> to vector<1x128xf32>
    %3 = arith.mulf %0, %0 : vector<8x128xf32>
    %cst_1 = arith.constant dense<0.000000e+00> : vector<128xf32>
    %4 = vector.multi_reduction <add>, %3, %cst_1 [0] : vector<8x128xf32> to vector<128xf32>
    %5 = vector.shape_cast %4 : vector<128xf32> to vector<1x128xf32>
    %cst_2 = arith.constant 1.250000e-01 : f32
    %6 = vector.broadcast %cst_2 : f32 to vector<1x128xf32>
    %7 = arith.mulf %2, %6 : vector<1x128xf32>
    %cst_3 = arith.constant 1.250000e-01 : f32
    %8 = vector.broadcast %cst_3 : f32 to vector<1x128xf32>
    %9 = arith.mulf %5, %8 : vector<1x128xf32>
    %10 = arith.mulf %7, %7 : vector<1x128xf32>
    %11 = arith.subf %9, %10 : vector<1x128xf32>
    %cst_4 = arith.constant 0.000000e+00 : f32
    %12 = vector.broadcast %cst_4 : f32 to vector<1x128xf32>
    %13 = arith.maximumf %11, %12 : vector<1x128xf32>
    %c0_5 = arith.constant 0 : index
    %c0_6 = arith.constant 0 : index
    %14 = vector.load %arg2[%c0_5, %c0_6] : memref<1x128xf32, #tpu.memory_space<vmem>>, vector<1x128xf32>
    %c0_7 = arith.constant 0 : index
    %c0_8 = arith.constant 0 : index
    %15 = vector.load %arg3[%c0_7, %c0_8] : memref<1x128xf32, #tpu.memory_space<vmem>>, vector<1x128xf32>
    %cst_9 = arith.constant 9.99999974E-6 : f32
    %16 = vector.broadcast %cst_9 : f32 to vector<1x128xf32>
    %17 = arith.addf %13, %16 : vector<1x128xf32>
    %18 = math.rsqrt %17 : vector<1x128xf32>
    %19 = arith.mulf %14, %18 : vector<1x128xf32>
    %20 = arith.mulf %7, %19 : vector<1x128xf32>
    %21 = arith.subf %15, %20 : vector<1x128xf32>
    %22 = vector.broadcast %19 : vector<1x128xf32> to vector<8x128xf32>
    %23 = arith.mulf %0, %22 : vector<8x128xf32>
    %24 = vector.broadcast %21 : vector<1x128xf32> to vector<8x128xf32>
    %25 = arith.addf %23, %24 : vector<8x128xf32>
    %c0_10 = arith.constant 0 : index
    %c0_11 = arith.constant 0 : index
    %26 = vector.load %arg6[%c0_10, %c0_11] : memref<8x128xf32, #tpu.memory_space<vmem>>, vector<8x128xf32>
    tpu.vector_store %arg6[%c0_10, %c0_11], %25 {strides = array<i32>} : memref<8x128xf32, #tpu.memory_space<vmem>>, vector<8x128xf32>,
    %c0_12 = arith.constant 0 : index
    %c0_13 = arith.constant 0 : index
    %27 = vector.load %arg4[%c0_12, %c0_13] : memref<1x128xf32, #tpu.memory_space<vmem>>, vector<1x128xf32>
    %c0_14 = arith.constant 0 : index
    %c0_15 = arith.constant 0 : index
    %28 = vector.load %arg5[%c0_14, %c0_15] : memref<1x128xf32, #tpu.memory_space<vmem>>, vector<1x128xf32>
    %cst_16 = arith.constant 0.899999976 : f32
    %29 = vector.broadcast %cst_16 : f32 to vector<1x128xf32>
    %30 = arith.mulf %29, %27 : vector<1x128xf32>
    %cst_17 = arith.constant 1.000000e-01 : f32
    %31 = vector.broadcast %cst_17 : f32 to vector<1x128xf32>
    %32 = arith.mulf %31, %7 : vector<1x128xf32>
    %33 = arith.addf %30, %32 : vector<1x128xf32>
    %c0_18 = arith.constant 0 : index
    %c0_19 = arith.constant 0 : index
    %34 = vector.load %arg7[%c0_18, %c0_19] : memref<1x128xf32, #tpu.memory_space<vmem>>, vector<1x128xf32>
    tpu.vector_store %arg7[%c0_18, %c0_19], %33 {strides = array<i32>} : memref<1x128xf32, #tpu.memory_space<vmem>>, vector<1x128xf32>,
    %cst_20 = arith.constant 0.899999976 : f32
    %35 = vector.broadcast %cst_20 : f32 to vector<1x128xf32>
    %36 = arith.mulf %35, %28 : vector<1x128xf32>
    %cst_21 = arith.constant 1.000000e-01 : f32
    %37 = vector.broadcast %cst_21 : f32 to vector<1x128xf32>
    %38 = arith.mulf %37, %13 : vector<1x128xf32>
    %39 = arith.addf %36, %38 : vector<1x128xf32>
    %c0_22 = arith.constant 0 : index
    %c0_23 = arith.constant 0 : index
    %40 = vector.load %arg8[%c0_22, %c0_23] : memref<1x128xf32, #tpu.memory_space<vmem>>, vector<1x128xf32>
    tpu.vector_store %arg8[%c0_22, %c0_23], %39 {strides = array<i32>} : memref<1x128xf32, #tpu.memory_space<vmem>>, vector<1x128xf32>,
    return
  }
  func.func @transform_0(%arg0: i32) -> (i32, i32) {
    %c0_i32 = arith.constant 0 : i32
    %c0_i32_0 = arith.constant 0 : i32
    return %c0_i32, %arg0 : i32, i32
  }
  func.func @transform_1(%arg0: i32) -> (i32, i32) {
    %c0_i32 = arith.constant 0 : i32
    %c0_i32_0 = arith.constant 0 : i32
    return %c0_i32, %arg0 : i32, i32
  }
  func.func @transform_2(%arg0: i32) -> (i32, i32) {
    %c0_i32 = arith.constant 0 : i32
    %c0_i32_0 = arith.constant 0 : i32
    return %c0_i32, %arg0 : i32, i32
  }
  func.func @transform_3(%arg0: i32) -> (i32, i32) {
    %c0_i32 = arith.constant 0 : i32
    %c0_i32_0 = arith.constant 0 : i32
    return %c0_i32, %arg0 : i32, i32
  }
  func.func @transform_4(%arg0: i32) -> (i32, i32) {
    %c0_i32 = arith.constant 0 : i32
    %c0_i32_0 = arith.constant 0 : i32
    return %c0_i32, %arg0 : i32, i32
  }
  func.func @transform_5(%arg0: i32) -> (i32, i32) {
    %c0_i32 = arith.constant 0 : i32
    %c0_i32_0 = arith.constant 0 : i32
    return %c0_i32, %arg0 : i32, i32
  }
  func.func @transform_6(%arg0: i32) -> (i32, i32) {
    %c0_i32 = arith.constant 0 : i32
    %c0_i32_0 = arith.constant 0 : i32
    return %c0_i32, %arg0 : i32, i32
  }
  func.func @transform_7(%arg0: i32) -> (i32, i32) {
    %c0_i32 = arith.constant 0 : i32
    %c0_i32_0 = arith.constant 0 : i32
    return %c0_i32, %arg0 : i32, i32
  }
}

</mosaic_0001>

<llo_original>
// kernel: tpu_custom_call.1
$region0: #{tpu_custom_call.1}
  #allocation0 [shape = 'u32[]', space=smem, size = 0x4, offset = 0x4, fixed_abs, tag = 'smem constant byte address 0x4 - core index']
  #allocation1 [shape = 'u32[144,128]{1,0:T(1,128)}', space=vmem, size = 0x12000, scoped, tag = 'internal scratch']
  %s0 = inlined_call_operand.hbm [shape: f32[8,32], index: 0, kind: input, shape index: {}]
  %s1 = inlined_call_operand.vmem [shape: f32[1,128], index: 1, kind: input, shape index: {}]
  %s2 = inlined_call_operand.vmem [shape: f32[1,128], index: 2, kind: input, shape index: {}]
  %s3 = inlined_call_operand.vmem [shape: f32[1,128], index: 3, kind: input, shape index: {}]
  %s4 = inlined_call_operand.vmem [shape: f32[1,128], index: 4, kind: input, shape index: {}]
  %s5 = inlined_call_operand.hbm [shape: f32[8,32], index: 5, kind: output, shape index: {0}]
  %s6 = inlined_call_operand.hbm [shape: f32[1,128], index: 6, kind: output, shape index: {1}]
  %s7 = inlined_call_operand.hbm [shape: f32[1,128], index: 7, kind: output, shape index: {2}]
  %8 = xla_tuple %s5, %s6, %s7
  %s9 = sld [smem:[#allocation0]]
  $region50: #{tpu_custom_call.1} parent=0
    _
  %s11 = ssub.s32 1, %s9
  %s12 = scalar_select 0, %s11, %s9
  $region1: #{tpu_custom_call.1} parent=0
    #allocation2 [shape = 'u8[4096]{0}', space=vmem, size = 0x1000, scoped, tag = 'input window, operand 0, single buffered']
    #allocation3 [shape = 's32[1]{0}', space=sflag, size = 0x4, scoped, tag = 'scoped memory for tpu_custom_call.1']
    #allocation4 [shape = 's32[1]{0}', space=sflag, size = 0x4, scoped, tag = 'scoped memory for tpu_custom_call.1']
    #allocation5 [shape = 'u8[4096]{0}', space=vmem, size = 0x1000, scoped, tag = 'output window, operand 0, single buffered']
    #allocation6 [shape = 'u8[512]{0}', space=vmem, size = 0x400, scoped, tag = 'output window, operand 1, single buffered']
    #allocation7 [shape = 's32[1]{0}', space=sflag, size = 0x4, scoped, tag = 'scoped memory for tpu_custom_call.1']
    #allocation8 [shape = 'u8[512]{0}', space=vmem, size = 0x400, scoped, tag = 'output window, operand 2, single buffered']
    %13 = vsyncpa [#allocation3], 0
    %14 = vsyncpa [#allocation4], 0
    %15 = vsyncpa [#allocation7], 0
    // Predicated region
    $region2: #{tpu_custom_call.1} parent=1 // pred_check
      _
    $region3: #{tpu_custom_call.1} parent=1 // pred_check_branch
      %17 = sbr.rel (0) target = $region5
    $region4: #{tpu_custom_call.1} parent=1 // pred_region
      %s19 = ssub.s32 128, 128
      %20 = vsyncadd [#allocation3], %s19
      %s22 = sshll.u32 [#allocation2], 4
      %s23 = int_to_ptr.vmem [resolvable:$true] %s22
      %25 = dma.hbm_to_vmem [thread:$0]  %s0, 128, %s23, [#allocation3]
    $region5: #{tpu_custom_call.1} parent=1 // pred_fallthru
      _
    // Predicated region
    $region6: #{tpu_custom_call.1} parent=1 // pred_check
      _
    $region7: #{tpu_custom_call.1} parent=1 // pred_check_branch
      %27 = sbr.rel (0) target = $region9
    $region8: #{tpu_custom_call.1} parent=1 // pred_region
      _
    $region9: #{tpu_custom_call.1} parent=1 // pred_fallthru
      _
    // Predicated region
    $region10: #{tpu_custom_call.1} parent=1 // pred_check
      _
    $region11: #{tpu_custom_call.1} parent=1 // pred_check_branch
      %29 = sbr.rel (0) target = $region13
    $region12: #{tpu_custom_call.1} parent=1 // pred_region
      _
    $region13: #{tpu_custom_call.1} parent=1 // pred_fallthru
      _
    // Predicated region
    $region14: #{tpu_custom_call.1} parent=1 // pred_check
      _
    $region15: #{tpu_custom_call.1} parent=1 // pred_check_branch
      %31 = sbr.rel (0) target = $region17
    $region16: #{tpu_custom_call.1} parent=1 // pred_region
      _
    $region17: #{tpu_custom_call.1} parent=1 // pred_fallthru
      _
    // Predicated region
    $region18: #{tpu_custom_call.1} parent=1 // pred_check
      _
    $region19: #{tpu_custom_call.1} parent=1 // pred_check_branch
      %33 = sbr.rel (0) target = $region21
    $region20: #{tpu_custom_call.1} parent=1 // pred_region
      _
    $region21: #{tpu_custom_call.1} parent=1 // pred_fallthru
      _
    // Predicated region
    $region22: #{tpu_custom_call.1} parent=1 // pred_check
      _
    $region23: #{tpu_custom_call.1} parent=1 // pred_check_branch
      %35 = sbr.rel (0) target = $region25
    $region24: #{tpu_custom_call.1} parent=1 // pred_region
      %36 = dma.done [#allocation3], 128
    $region25: #{tpu_custom_call.1} parent=1 // pred_fallthru
      _
    %v37 = vld [vmem:[#allocation2] sm:$0xff]
    %v38 = vrot.slane %v37, 4
    %v39 = vadd.f32 %v37, %v38
    %v40 = vrot.slane %v39, 2
    %v41 = vadd.f32 %v39, %v40
    %v42 = vrot.slane %v41, 1
    %v43 = vadd.f32 %v41, %v42
    %v44 = vmul.f32 %v37, %v37
    %v45 = vrot.slane %v44, 4
    %v46 = vadd.f32 %v44, %v45
    %v47 = vrot.slane %v46, 2
    %v48 = vadd.f32 %v46, %v47
    %v49 = vrot.slane %v48, 1
    %v50 = vadd.f32 %v48, %v49
    %v51 = vmul.f32 %v43, 0.125
    %v52 = vmul.f32 %v50, 0.125
    %v53 = vmul.f32 %v51, %v51
    %v54 = vsub.f32 %v52, %v53
    %v55 = vmax.f32 %v54, 0.0
    %v56 = vld [vmem:[%s1] sm:$0x1]
    %v57 = vld [vmem:[%s2] sm:$0x1]
    %v58 = vadd.f32 %v55, 1e-05
    %v59 = vrsqrt.pop %v58
    %v60 = vmul.f32 %v56, %v59
    %v61 = vmul.f32 %v51, %v60
    %v62 = vsub.f32 %v57, %v61
    %v64 = vlaneseq
    %v65 = vshrl.u32 %v64, 7
    %v66 = vsub.s32 0, %v65
    %v67 = vrot.slane %v60, %v66
    %v69 = vmul.f32 %v37, %v67
    %v71 = vlaneseq
    %v72 = vshrl.u32 %v71, 7
    %v73 = vsub.s32 0, %v72
    %v74 = vrot.slane %v62, %v73
    %v76 = vadd.f32 %v69, %v74
    %77 = vst [vmem:[#allocation5] sm:$0xff] %v76
    %v78 = vld [vmem:[%s3] sm:$0x1]
    %v79 = vld [vmem:[%s4] sm:$0x1]
    %v80 = vmul.f32 %v78, 0.9
    %v81 = vmul.f32 %v51, 0.1
    %v82 = vadd.f32 %v80, %v81
    %83 = vst [vmem:[#allocation6] sm:$0x1] %v82
    %v84 = vmul.f32 %v79, 0.9
    %v85 = vmul.f32 %v55, 0.1
    %v86 = vadd.f32 %v84, %v85
    %87 = vst [vmem:[#allocation8] sm:$0x1] %v86
    // Predicated region
    $region26: #{tpu_custom_call.1} parent=1 // pred_check
      _
    $region27: #{tpu_custom_call.1} parent=1 // pred_check_branch
      %89 = sbr.rel (0) target = $region29
    $region28: #{tpu_custom_call.1} parent=1 // pred_region
      %s91 = ssub.s32 128, 128
      %92 = vsyncadd [#allocation4], %s91
      %s94 = sshll.u32 [#allocation5], 4
      %s95 = int_to_ptr.vmem [resolvable:$true] %s94
      %97 = dma.vmem_to_hbm [thread:$0]  %s95, 128, %s5, [#allocation4]
    $region29: #{tpu_custom_call.1} parent=1 // pred_fallthru
      _
    // Predicated region
    $region30: #{tpu_custom_call.1} parent=1 // pred_check
      _
    $region31: #{tpu_custom_call.1} parent=1 // pred_check_branch
      %99 = sbr.rel (0) target = $region33
    $region32: #{tpu_custom_call.1} parent=1 // pred_region
      %s101 = ssub.s32 16, 16
      %102 = vsyncadd [#allocation7], %s101
      %s104 = sshll.u32 [#allocation6], 4
      %s105 = int_to_ptr.vmem [resolvable:$true] %s104
      %107 = dma.vmem_to_hbm [thread:$0]  %s105, 16, %s6, [#allocation7]
    $region33: #{tpu_custom_call.1} parent=1 // pred_fallthru
      _
    // Predicated region
    $region34: #{tpu_custom_call.1} parent=1 // pred_check
      _
    $region35: #{tpu_custom_call.1} parent=1 // pred_check_branch
      %109 = sbr.rel (0) target = $region37
    $region36: #{tpu_custom_call.1} parent=1 // pred_region
      %s111 = ssub.s32 16, 16
      %112 = vsyncadd [#allocation7], %s111
      %s114 = sshll.u32 [#allocation8], 4
      %s115 = int_to_ptr.vmem [resolvable:$true] %s114
      %117 = dma.vmem_to_hbm [thread:$0]  %s115, 16, %s7, [#allocation7]
    $region37: #{tpu_custom_call.1} parent=1 // pred_fallthru
      _
    // Predicated region
    $region38: #{tpu_custom_call.1} parent=1 // pred_check
      _
    $region39: #{tpu_custom_call.1} parent=1 // pred_check_branch
      %119 = sbr.rel (0) target = $region41
    $region40: #{tpu_custom_call.1} parent=1 // pred_region
      %120 = dma.done [#allocation4], 128
    $region41: #{tpu_custom_call.1} parent=1 // pred_fallthru
      _
    // Predicated region
    $region42: #{tpu_custom_call.1} parent=1 // pred_check
      _
    $region43: #{tpu_custom_call.1} parent=1 // pred_check_branch
      %122 = sbr.rel (0) target = $region45
    $region44: #{tpu_custom_call.1} parent=1 // pred_region
      %123 = dma.done [#allocation7], 16
    $region45: #{tpu_custom_call.1} parent=1 // pred_fallthru
      _
    // Predicated region
    $region46: #{tpu_custom_call.1} parent=1 // pred_check
      _
    $region47: #{tpu_custom_call.1} parent=1 // pred_check_branch
      %125 = sbr.rel (0) target = $region49
    $region48: #{tpu_custom_call.1} parent=1 // pred_region
      %126 = dma.done [#allocation7], 16
    $region49: #{tpu_custom_call.1} parent=1 // pred_fallthru
      _
    %127 = vsyncpa [#allocation3], 1
    %128 = vsyncpa [#allocation4], 1
    %129 = vsyncpa [#allocation7], 1

</llo_original>
